<compile_context>
chip_gen: v5e
topology: v5e:2x2
jax: 0.10.0
libtpu: 0.0.40
codegen_flags: <defaults>
</compile_context>

<pallas_src>
import functools

import jax
import jax.numpy as jnp
from jax import lax
from jax.experimental import pallas as pl
from jax.experimental.pallas import tpu as pltpu


# ----------------------------------------------------------------------------
# Tiling plan helpers
# ----------------------------------------------------------------------------
def _ceil_to(n, m):
    return -(-n // m) * m


def _largest_divisor_tile(n, pref, align):
    """Largest multiple-of-`align` divisor of n that is <= pref; n if n<=pref."""
    if n <= pref:
        return n
    t = (pref // align) * align
    while t >= align:
        if n % t == 0:
            return t
        t -= align
    return align


def _plan_k_pad(K, tk=None):
    """Padded K so a real, 128-aligned K tile exists (DrQ-v2 repr_dim ~39200
    has no 128-multiple divisor -> zero-pad instead of a full-K obs tile)."""
    if tk is not None:
        return _ceil_to(K, tk)
    if K <= 4096:
        return K                          # single full-extent K tile, no pad
    K_pad = _ceil_to(K, 128)              # minimal pad (< 0.33% extra)
    if _largest_divisor_tile(K_pad, 4096, 128) < 1024:
        K_pad = _ceil_to(K, 2048)         # accept a bit more pad for big tiles
    return K_pad


def _plan_tb(B, tb=None):
    """Batch tile: keep B/tb <= 2 (trunk weight is re-streamed once per batch
    tile) while still yielding >=2 batch tiles for v7x's two TensorCores."""
    if tb is not None:
        return tb
    if B % 8 != 0 or B <= 8:
        return B
    return _largest_divisor_tile(B, max(8, min(512, B // 2)), 8)


def _block_bytes(shape, itemsize):
    """VMEM bytes of one buffer of a block, padded to (8, 128) tiles."""
    lead = 1
    for d in shape[:-2]:
        lead *= int(d)
    return lead * _ceil_to(int(shape[-2]), 8) * _ceil_to(int(shape[-1]), 128) * itemsize


# ----------------------------------------------------------------------------
# Kernel
# ----------------------------------------------------------------------------
def _critic_kernel(obs_ref, wt_ref, bt_ref, gamma_ref, beta_ref,
                   act_ref, w1h_ref, w1a_ref, b1_ref, w2_ref, b2_ref,
                   w3_ref, b3_ref, out_ref, acc_ref):
    k = pl.program_id(1)
    nk = pl.num_programs(1)
    cdt = wt_ref.dtype                    # matmul compute dtype (f32 or bf16)

    # Trunk matmul partial sum for this K tile (f32 accumulation on the MXU).
    psum = jnp.dot(obs_ref[...].astype(cdt), wt_ref[...],
                   preferred_element_type=jnp.float32)

    @pl.when(k == 0)
    def _first():                         # direct store: no zero-init + add
        acc_ref[...] = psum

    @pl.when(k > 0)
    def _accum():
        acc_ref[...] += psum

    @pl.when(k == nk - 1)
    def _finalize():
        # LayerNorm (biased variance, eps=1e-5, matching PyTorch) + tanh, f32.
        x = acc_ref[...] + bt_ref[...]
        mean = jnp.mean(x, axis=-1, keepdims=True)
        var = jnp.mean((x - mean) ** 2, axis=-1, keepdims=True)
        h = jnp.tanh((x - mean) * lax.rsqrt(var + 1e-5)
                     * gamma_ref[...] + beta_ref[...])

        hc = h.astype(cdt)
        ac = act_ref[...].astype(cdt)
        E, H, _ = w2_ref.shape

        # First Q layer.  concat([h, action]) @ W1 == h @ W1[:F] + a @ W1[F:],
        # so the concat never materializes.  When H is lane-aligned the heads
        # are also fused along N (one (F, E*H) matmul instead of E narrow
        # ones); prepare_params() picks the weight layout.
        if len(w1h_ref.shape) == 2:       # fused-heads layout: (F, E*H)
            h1 = jnp.dot(hc, w1h_ref[...], preferred_element_type=jnp.float32)
            h1 = h1 + jnp.dot(ac, w1a_ref[...],
                              preferred_element_type=jnp.float32)
            h1 = jnp.maximum(h1 + b1_ref[...], 0.0)
            h1_heads = [h1[:, e * H:(e + 1) * H] for e in range(E)]
        else:                             # per-head layout: (E, F, H)
            h1_heads = []
            for e in range(E):
                t = jnp.dot(hc, w1h_ref[e], preferred_element_type=jnp.float32)
                t = t + jnp.dot(ac, w1a_ref[e],
                                preferred_element_type=jnp.float32)
                h1_heads.append(jnp.maximum(t + b1_ref[e], 0.0))

        q_cols = []
        for e in range(E):                # E is tiny (2): fully unrolled
            h2 = jnp.dot(h1_heads[e].astype(cdt), w2_ref[e],
                         preferred_element_type=jnp.float32)
            h2 = jnp.maximum(h2 + b2_ref[e], 0.0)
            # N=1 output layer as a VPU/XLU reduction (skip a 1/128 MXU pass).
            q_cols.append(jnp.sum(h2 * w3_ref[e], axis=-1, keepdims=True))

        # Single (tb, E) store for all heads.
        out_ref[...] = jnp.concatenate(q_cols, axis=-1) + b3_ref[...]


# ----------------------------------------------------------------------------
# One-time parameter repacking (call once, reuse across forward calls)
# ----------------------------------------------------------------------------
def prepare_params(params, *, compute_dtype=jnp.float32, tk=None):
    """Repack module params into the kernel layout.  Casts, head fusion and
    trunk-weight K padding happen here, never on the per-call path.  If an
    explicit tk will be passed to critic_forward, pass the same tk here."""
    wt = jnp.asarray(params["wt"], jnp.float32)            # (K, F)
    K, F = wt.shape
    w1s = jnp.asarray(params["w1s"])                       # (E, F+A, H)
    E, _, H = w1s.shape
    cdt = compute_dtype

    K_pad = _plan_k_pad(K, tk)
    wt_p = wt.astype(cdt)
    if K_pad > K:
        wt_p = jnp.pad(wt_p, ((0, K_pad - K), (0, 0)))     # zero rows: exact

    w1h = w1s[:, :F, :]                                    # (E, F, H)
    w1a = w1s[:, F:, :]                                    # (E, A, H)
    b1 = jnp.asarray(params["b1s"]).reshape(E, 1, H)
    if H % 128 == 0 and E > 1:
        # Fuse the heads' first layers along N (wider MXU pushes); the later
        # per-head slices of h1 then land on lane (128) boundaries.
        w1h = jnp.concatenate([w1h[e] for e in range(E)], axis=-1)   # (F, E*H)
        w1a = jnp.concatenate([w1a[e] for e in range(E)], axis=-1)   # (A, E*H)
        b1 = jnp.asarray(params["b1s"]).reshape(1, E * H)

    return {
        "wt": wt_p,                                                   # (K_pad, F)
        "bt": jnp.asarray(params["bt"]).reshape(1, F).astype(jnp.float32),
        "gamma": jnp.asarray(params["gamma"]).reshape(1, F).astype(jnp.float32),
        "beta": jnp.asarray(params["beta"]).reshape(1, F).astype(jnp.float32),
        "w1h": w1h.astype(cdt),
        "w1a": w1a.astype(cdt),
        "b1": b1.astype(jnp.float32),
        "w2": jnp.asarray(params["w2s"]).astype(cdt),                 # (E, H, H)
        "b2": jnp.asarray(params["b2s"]).reshape(E, 1, H).astype(jnp.float32),
        "w3": jnp.transpose(jnp.asarray(params["w3s"]),
                            (0, 2, 1)).astype(jnp.float32),           # (E, 1, H)
        "b3": jnp.asarray(params["b3s"]).reshape(1, E).astype(jnp.float32),
    }


# ----------------------------------------------------------------------------
# Forward wrapper
# ----------------------------------------------------------------------------
def critic_forward(obs, action, prep, *, tb=None, tk=None):
    """obs (B, repr_dim), action (B, A) -> list of E (B, 1) Q values."""
    B, K = obs.shape
    A = action.shape[1]
    K_pad, F = prep["wt"].shape
    E, H, _ = prep["w2"].shape
    assert K_pad >= K, (K_pad, K)

    tb = _plan_tb(B, tb)
    assert B % tb == 0 and (tb % 8 == 0 or tb == B), (B, tb)

    if tk is None:
        tk = (_largest_divisor_tile(K_pad, 4096, 128)
              if K_pad % 128 == 0 else K_pad)
    assert K_pad % tk == 0 and (tk % 128 == 0 or tk == K_pad), (K_pad, tk)

    # Pad the obs stream along K if needed.  NOTE: ideally the upstream encoder
    # already emits a 128-padded (and bf16) repr so this is a no-op; obs is
    # otherwise streamed as-is (no wrapper cast; the kernel casts the tile to
    # the matmul compute dtype on-chip).
    if K_pad > K:
        obs = jnp.pad(obs, ((0, 0), (0, K_pad - K)))

    grid = (B // tb, K_pad // tk)

    def _inv_spec(arr):  # grid-invariant weight: stays VMEM resident, no re-DMA
        nd = arr.ndim
        return pl.BlockSpec(arr.shape, lambda b, k, _n=nd: (0,) * _n)

    in_specs = [
        pl.BlockSpec((tb, tk), lambda b, k: (b, k)),        # obs   (streamed)
        pl.BlockSpec((tk, F), lambda b, k: (k, 0)),         # wt    (per K tile)
        _inv_spec(prep["bt"]), _inv_spec(prep["gamma"]), _inv_spec(prep["beta"]),
        pl.BlockSpec((tb, A), lambda b, k: (b, 0)),         # action (per B tile)
        _inv_spec(prep["w1h"]), _inv_spec(prep["w1a"]), _inv_spec(prep["b1"]),
        _inv_spec(prep["w2"]), _inv_spec(prep["b2"]),
        _inv_spec(prep["w3"]), _inv_spec(prep["b3"]),
    ]

    # Derived VMEM budget: 2x (double buffering) every block + accumulator,
    # padded to (8,128) tiles, plus headroom; clamped under v7x's 64 MiB.
    blocks = [((tb, tk), obs.dtype.itemsize),
              ((tk, F), prep["wt"].dtype.itemsize),
              (prep["bt"].shape, 4), (prep["gamma"].shape, 4),
              (prep["beta"].shape, 4),
              ((tb, A), action.dtype.itemsize),
              (prep["w1h"].shape, prep["w1h"].dtype.itemsize),
              (prep["w1a"].shape, prep["w1a"].dtype.itemsize),
              (prep["b1"].shape, 4),
              (prep["w2"].shape, prep["w2"].dtype.itemsize),
              (prep["b2"].shape, 4), (prep["w3"].shape, 4), (prep["b3"].shape, 4),
              ((tb, E), 4)]
    est = sum(2 * _block_bytes(s, it) for s, it in blocks) + _block_bytes((tb, F), 4)
    vmem_limit = int(min(max(est * 3 // 2 + (4 << 20), 16 << 20), 56 << 20))

    q_mat = pl.pallas_call(
        _critic_kernel,
        out_shape=jax.ShapeDtypeStruct((B, E), jnp.float32),
        grid_spec=pltpu.PrefetchScalarGridSpec(
            num_scalar_prefetch=0,
            grid=grid,
            in_specs=in_specs,
            out_specs=pl.BlockSpec((tb, E), lambda b, k: (b, 0)),
            scratch_shapes=[pltpu.VMEM((tb, F), jnp.float32)],
        ),
        compiler_params=pltpu.CompilerParams(
            dimension_semantics=("parallel", "arbitrary"),
            vmem_limit_bytes=vmem_limit),
    )(obs, prep["wt"], prep["bt"], prep["gamma"], prep["beta"], action,
      prep["w1h"], prep["w1a"], prep["b1"], prep["w2"], prep["b2"],
      prep["w3"], prep["b3"])

    # list of (B, 1) tensors, matching the PyTorch module's q_list
    return [q_mat[:, e:e + 1] for e in range(E)]


# ----------------------------------------------------------------------------
# Deterministic synthetic parameters (module layout) + pure-JAX reference
# ----------------------------------------------------------------------------
def init_params(key, repr_dim, feature_dim, action_dim, hidden_dim, ensemble):
    ks = jax.random.split(key, 8)
    s = 0.05
    return {
        "wt": s * jax.random.normal(ks[0], (repr_dim, feature_dim), jnp.float32),
        "bt": s * jax.random.normal(ks[1], (feature_dim,), jnp.float32),
        "gamma": jnp.ones((feature_dim,), jnp.float32),
        "beta": jnp.zeros((feature_dim,), jnp.float32),
        "w1s": s * jax.random.normal(ks[2], (ensemble, feature_dim + action_dim,
                                             hidden_dim), jnp.float32),
        "b1s": s * jax.random.normal(ks[3], (ensemble, hidden_dim), jnp.float32),
        "w2s": s * jax.random.normal(ks[4], (ensemble, hidden_dim, hidden_dim),
                                     jnp.float32),
        "b2s": s * jax.random.normal(ks[5], (ensemble, hidden_dim), jnp.float32),
        "w3s": s * jax.random.normal(ks[6], (ensemble, hidden_dim, 1), jnp.float32),
        "b3s": s * jax.random.normal(ks[7], (ensemble, 1), jnp.float32),
    }


def ref_forward(obs, action, p):
    x = obs @ p["wt"] + p["bt"]
    mu = x.mean(-1, keepdims=True)
    var = ((x - mu) ** 2).mean(-1, keepdims=True)
    h = jnp.tanh((x - mu) / jnp.sqrt(var + 1e-5) * p["gamma"] + p["beta"])
    ha = jnp.concatenate([h, action], axis=-1)
    outs = []
    for e in range(p["w2s"].shape[0]):
        h1 = jnp.maximum(ha @ p["w1s"][e] + p["b1s"][e], 0.0)
        h2 = jnp.maximum(h1 @ p["w2s"][e] + p["b2s"][e], 0.0)
        outs.append(h2 @ p["w3s"][e] + p["b3s"][e])
    return outs


if __name__ == "__main__":
    B = 16
    REPR_DIM = 1024      # real DrQ-v2 repr_dim is ~39200; kept small here
    FEATURE_DIM = 24
    ACTION_DIM = 6
    HIDDEN_DIM = 32
    ENSEMBLE = 2

    key = jax.random.PRNGKey(0)
    k_obs, k_act, k_p, k_p2 = jax.random.split(key, 4)
    obs = jax.random.normal(k_obs, (B, REPR_DIM), jnp.float32)
    action = jax.random.normal(k_act, (B, ACTION_DIM), jnp.float32)

    params = init_params(k_p, REPR_DIM, FEATURE_DIM, ACTION_DIM,
                         HIDDEN_DIM, ENSEMBLE)
    refs = ref_forward(obs, action, params)

    # 1) f32, explicit small tiles: exercises the batch axis (parallel), the
    #    K reduction axis (arbitrary) and the per-head epilogue (H % 128 != 0).
    prep = prepare_params(params, compute_dtype=jnp.float32, tk=256)
    q = jax.jit(functools.partial(critic_forward, tb=8, tk=256))(obs, action, prep)
    q = [jax.block_until_ready(t) for t in q]
    for qe, re in zip(q, refs):
        assert qe.shape == (B, 1), qe.shape
        assert jnp.allclose(qe, re, atol=5e-4, rtol=5e-3), (qe, re)

    # 2) auto-planned tiles (single K tile here since repr_dim <= 4096).
    q = jax.jit(critic_forward)(obs, action, prep)
    q = [jax.block_until_ready(t) for t in q]
    for qe, re in zip(q, refs):
        assert jnp.allclose(qe, re, atol=5e-4, rtol=5e-3)

    # 3) bf16 matmul operands (f32 LayerNorm/tanh/bias math, f32 accumulation).
    prep_bf16 = prepare_params(params, compute_dtype=jnp.bfloat16, tk=256)
    q = jax.jit(functools.partial(critic_forward, tb=8, tk=256))(obs, action,
                                                                 prep_bf16)
    q = [jax.block_until_ready(t) for t in q]
    for qe, re in zip(q, refs):
        assert qe.shape == (B, 1)
        assert bool(jnp.all(jnp.isfinite(qe)))
        assert jnp.allclose(qe, re, atol=5e-2, rtol=1e-1)

    # 4) lane-aligned hidden dim (H=128): exercises the fused-heads first layer.
    params2 = init_params(k_p2, REPR_DIM, FEATURE_DIM, ACTION_DIM, 128, ENSEMBLE)
    refs2 = ref_forward(obs, action, params2)
    prep2 = prepare_params(params2, compute_dtype=jnp.float32, tk=256)
    q2 = jax.jit(functools.partial(critic_forward, tb=8, tk=256))(obs, action, prep2)
    q2 = [jax.block_until_ready(t) for t in q2]
    for qe, re in zip(q2, refs2):
        assert jnp.allclose(qe, re, atol=5e-4, rtol=5e-3), (qe, re)

    # TODO(synk): NoisyLinear / reset_noise of the module is training-time
    # parameter machinery and is not part of this forward kernel.
    print("KERNEL_OK")
</pallas_src>

<mosaic_0001>
module attributes {stable_mosaic.version = 11 : i64} {
  func.func @_critic_kernel(%arg0: i32, %arg1: i32, %arg2: memref<8x256xf32, #tpu.memory_space<vmem>>, %arg3: memref<256x24xf32, #tpu.memory_space<vmem>>, %arg4: memref<1x24xf32, #tpu.memory_space<vmem>>, %arg5: memref<1x24xf32, #tpu.memory_space<vmem>>, %arg6: memref<1x24xf32, #tpu.memory_space<vmem>>, %arg7: memref<8x6xf32, #tpu.memory_space<vmem>>, %arg8: memref<2x24x32xf32, #tpu.memory_space<vmem>>, %arg9: memref<2x6x32xf32, #tpu.memory_space<vmem>>, %arg10: memref<2x1x32xf32, #tpu.memory_space<vmem>>, %arg11: memref<2x32x32xf32, #tpu.memory_space<vmem>>, %arg12: memref<2x1x32xf32, #tpu.memory_space<vmem>>, %arg13: memref<2x1x32xf32, #tpu.memory_space<vmem>>, %arg14: memref<1x2xf32, #tpu.memory_space<vmem>>, %arg15: memref<8x2xf32, #tpu.memory_space<vmem>>, %arg16: memref<8x24xf32, #tpu.memory_space<vmem>>) attributes {dimension_semantics = [#tpu.dimension_semantics<parallel>, #tpu.dimension_semantics<arbitrary>], iteration_bounds = array<i64: 2, 4>, scalar_prefetch = 0 : i64, scratch_operands = 1 : i64, tpu.core_type = #tpu.core_type<tc>, window_params = [{transform_indices = @transform_0, window_bounds = array<i64: 8, 256>}, {transform_indices = @transform_1, window_bounds = array<i64: 256, 24>}, {pipeline_mode = #tpu.pipeline_mode<synchronous>, transform_indices = @transform_2, window_bounds = array<i64: 1, 24>}, {pipeline_mode = #tpu.pipeline_mode<synchronous>, transform_indices = @transform_3, window_bounds = array<i64: 1, 24>}, {pipeline_mode = #tpu.pipeline_mode<synchronous>, transform_indices = @transform_4, window_bounds = array<i64: 1, 24>}, {transform_indices = @transform_5, window_bounds = array<i64: 8, 6>}, {pipeline_mode = #tpu.pipeline_mode<synchronous>, transform_indices = @transform_6, window_bounds = array<i64: 2, 24, 32>}, {pipeline_mode = #tpu.pipeline_mode<synchronous>, transform_indices = @transform_7, window_bounds = array<i64: 2, 6, 32>}, {pipeline_mode = #tpu.pipeline_mode<synchronous>, transform_indices = @transform_8, window_bounds = array<i64: 2, 1, 32>}, {pipeline_mode = #tpu.pipeline_mode<synchronous>, transform_indices = @transform_9, window_bounds = array<i64: 2, 32, 32>}, {pipeline_mode = #tpu.pipeline_mode<synchronous>, transform_indices = @transform_10, window_bounds = array<i64: 2, 1, 32>}, {pipeline_mode = #tpu.pipeline_mode<synchronous>, transform_indices = @transform_11, window_bounds = array<i64: 2, 1, 32>}, {pipeline_mode = #tpu.pipeline_mode<synchronous>, transform_indices = @transform_12, window_bounds = array<i64: 1, 2>}, {transform_indices = @transform_13, window_bounds = array<i64: 8, 2>}]} {
    %c0 = arith.constant 0 : index
    %c0_0 = arith.constant 0 : index
    %0 = vector.load %arg2[%c0, %c0_0] : memref<8x256xf32, #tpu.memory_space<vmem>>, vector<8x256xf32>
    %c0_1 = arith.constant 0 : index
    %c0_2 = arith.constant 0 : index
    %1 = vector.load %arg3[%c0_1, %c0_2] : memref<256x24xf32, #tpu.memory_space<vmem>>, vector<256x24xf32>
    %cst = arith.constant dense<0.000000e+00> : vector<8x24xf32>
    %2 = tpu.matmul %0, %1, %cst {dimension_numbers = #tpu.dot_dimension_numbers<[1], [0], [0], [1], [0, 0, 1, 1], [], []>} : vector<8x256xf32>, vector<256x24xf32>, vector<8x24xf32> -> vector<8x24xf32>
    %c0_i32 = arith.constant 0 : i32
    %3 = arith.cmpi eq, %arg1, %c0_i32 : i32
    %4 = arith.extui %3 : i1 to i32
    %c0_i32_3 = arith.constant 0 : i32
    %5 = arith.cmpi ne, %4, %c0_i32_3 : i32
    scf.if %5 {
      %c0_7 = arith.constant 0 : index
      %c0_8 = arith.constant 0 : index
      %12 = vector.load %arg16[%c0_7, %c0_8] : memref<8x24xf32, #tpu.memory_space<vmem>>, vector<8x24xf32>
      tpu.vector_store %arg16[%c0_7, %c0_8], %2 {strides = array<i32>} : memref<8x24xf32, #tpu.memory_space<vmem>>, vector<8x24xf32>,
    } else {
    }
    %c0_i32_4 = arith.constant 0 : i32
    %6 = arith.cmpi sgt, %arg1, %c0_i32_4 : i32
    %7 = arith.extui %6 : i1 to i32
    %c0_i32_5 = arith.constant 0 : i32
    %8 = arith.cmpi ne, %7, %c0_i32_5 : i32
    scf.if %8 {
      %c0_7 = arith.constant 0 : index
      %c0_8 = arith.constant 0 : index
      %12 = vector.load %arg16[%c0_7, %c0_8] : memref<8x24xf32, #tpu.memory_space<vmem>>, vector<8x24xf32>
      %13 = arith.addf %12, %2 : vector<8x24xf32>
      %c0_9 = arith.constant 0 : index
      %c0_10 = arith.constant 0 : index
      %14 = vector.load %arg16[%c0_9, %c0_10] : memref<8x24xf32, #tpu.memory_space<vmem>>, vector<8x24xf32>
      tpu.vector_store %arg16[%c0_9, %c0_10], %13 {strides = array<i32>} : memref<8x24xf32, #tpu.memory_space<vmem>>, vector<8x24xf32>,
    } else {
    }
    %c3_i32 = arith.constant 3 : i32
    %9 = arith.cmpi eq, %arg1, %c3_i32 : i32
    %10 = arith.extui %9 : i1 to i32
    %c0_i32_6 = arith.constant 0 : i32
    %11 = arith.cmpi ne, %10, %c0_i32_6 : i32
    scf.if %11 {
      %c0_7 = arith.constant 0 : index
      %c0_8 = arith.constant 0 : index
      %12 = vector.load %arg16[%c0_7, %c0_8] : memref<8x24xf32, #tpu.memory_space<vmem>>, vector<8x24xf32>
      %c0_9 = arith.constant 0 : index
      %c0_10 = arith.constant 0 : index
      %13 = vector.load %arg4[%c0_9, %c0_10] : memref<1x24xf32, #tpu.memory_space<vmem>>, vector<1x24xf32>
      %14 = vector.broadcast %13 : vector<1x24xf32> to vector<8x24xf32>
      %15 = arith.addf %12, %14 : vector<8x24xf32>
      %cst_11 = arith.constant dense<0.000000e+00> : vector<8xf32>
      %16 = vector.multi_reduction <add>, %15, %cst_11 [1] : vector<8x24xf32> to vector<8xf32>
      %17 = vector.shape_cast %16 : vector<8xf32> to vector<8x1xf32>
      %cst_12 = arith.constant 2.400000e+01 : f32
      %18 = vector.broadcast %cst_12 : f32 to vector<8x1xf32>
      %19 = arith.divf %17, %18 : vector<8x1xf32>
      %20 = vector.broadcast %19 : vector<8x1xf32> to vector<8x24xf32>
      %21 = arith.subf %15, %20 : vector<8x24xf32>
      %22 = arith.mulf %21, %21 : vector<8x24xf32>
      %cst_13 = arith.constant dense<0.000000e+00> : vector<8xf32>
      %23 = vector.multi_reduction <add>, %22, %cst_13 [1] : vector<8x24xf32> to vector<8xf32>
      %24 = vector.shape_cast %23 : vector<8xf32> to vector<8x1xf32>
      %cst_14 = arith.constant 2.400000e+01 : f32
      %25 = vector.broadcast %cst_14 : f32 to vector<8x1xf32>
      %26 = arith.divf %24, %25 : vector<8x1xf32>
      %27 = vector.broadcast %19 : vector<8x1xf32> to vector<8x24xf32>
      %28 = arith.subf %15, %27 : vector<8x24xf32>
      %cst_15 = arith.constant 9.99999974E-6 : f32
      %29 = vector.broadcast %cst_15 : f32 to vector<8x1xf32>
      %30 = arith.addf %26, %29 : vector<8x1xf32>
      %31 = math.rsqrt %30 : vector<8x1xf32>
      %32 = vector.broadcast %31 : vector<8x1xf32> to vector<8x24xf32>
      %33 = arith.mulf %28, %32 : vector<8x24xf32>
      %c0_16 = arith.constant 0 : index
      %c0_17 = arith.constant 0 : index
      %34 = vector.load %arg5[%c0_16, %c0_17] : memref<1x24xf32, #tpu.memory_space<vmem>>, vector<1x24xf32>
      %35 = vector.broadcast %34 : vector<1x24xf32> to vector<8x24xf32>
      %36 = arith.mulf %33, %35 : vector<8x24xf32>
      %c0_18 = arith.constant 0 : index
      %c0_19 = arith.constant 0 : index
      %37 = vector.load %arg6[%c0_18, %c0_19] : memref<1x24xf32, #tpu.memory_space<vmem>>, vector<1x24xf32>
      %38 = vector.broadcast %37 : vector<1x24xf32> to vector<8x24xf32>
      %39 = arith.addf %36, %38 : vector<8x24xf32>
      %40 = math.tanh %39 : vector<8x24xf32>
      %c0_20 = arith.constant 0 : index
      %c0_21 = arith.constant 0 : index
      %41 = vector.load %arg7[%c0_20, %c0_21] : memref<8x6xf32, #tpu.memory_space<vmem>>, vector<8x6xf32>
      %c0_22 = arith.constant 0 : index
      %c0_23 = arith.constant 0 : index
      %c0_24 = arith.constant 0 : index
      %42 = vector.load %arg8[%c0_22, %c0_23, %c0_24] : memref<2x24x32xf32, #tpu.memory_space<vmem>>, vector<1x24x32xf32>
      %43 = vector.shape_cast %42 : vector<1x24x32xf32> to vector<24x32xf32>
      %cst_25 = arith.constant dense<0.000000e+00> : vector<8x32xf32>
      %44 = tpu.matmul %40, %43, %cst_25 {dimension_numbers = #tpu.dot_dimension_numbers<[1], [0], [0], [1], [0, 0, 1, 1], [], []>} : vector<8x24xf32>, vector<24x32xf32>, vector<8x32xf32> -> vector<8x32xf32>
      %c0_26 = arith.constant 0 : index
      %c0_27 = arith.constant 0 : index
      %c0_28 = arith.constant 0 : index
      %45 = vector.load %arg9[%c0_26, %c0_27, %c0_28] : memref<2x6x32xf32, #tpu.memory_space<vmem>>, vector<1x6x32xf32>
      %46 = vector.shape_cast %45 : vector<1x6x32xf32> to vector<6x32xf32>
      %cst_29 = arith.constant dense<0.000000e+00> : vector<8x32xf32>
      %47 = tpu.matmul %41, %46, %cst_29 {dimension_numbers = #tpu.dot_dimension_numbers<[1], [0], [0], [1], [0, 0, 1, 1], [], []>} : vector<8x6xf32>, vector<6x32xf32>, vector<8x32xf32> -> vector<8x32xf32>
      %48 = arith.addf %44, %47 : vector<8x32xf32>
      %c0_30 = arith.constant 0 : index
      %c0_31 = arith.constant 0 : index
      %c0_32 = arith.constant 0 : index
      %49 = vector.load %arg10[%c0_30, %c0_31, %c0_32] : memref<2x1x32xf32, #tpu.memory_space<vmem>>, vector<1x1x32xf32>
      %50 = vector.shape_cast %49 : vector<1x1x32xf32> to vector<1x32xf32>
      %51 = vector.broadcast %50 : vector<1x32xf32> to vector<8x32xf32>
      %52 = arith.addf %48, %51 : vector<8x32xf32>
      %cst_33 = arith.constant 0.000000e+00 : f32
      %53 = vector.broadcast %cst_33 : f32 to vector<8x32xf32>
      %54 = arith.maximumf %52, %53 : vector<8x32xf32>
      %c1 = arith.constant 1 : index
      %c0_34 = arith.constant 0 : index
      %c0_35 = arith.constant 0 : index
      %55 = vector.load %arg8[%c1, %c0_34, %c0_35] : memref<2x24x32xf32, #tpu.memory_space<vmem>>, vector<1x24x32xf32>
      %56 = vector.shape_cast %55 : vector<1x24x32xf32> to vector<24x32xf32>
      %cst_36 = arith.constant dense<0.000000e+00> : vector<8x32xf32>
      %57 = tpu.matmul %40, %56, %cst_36 {dimension_numbers = #tpu.dot_dimension_numbers<[1], [0], [0], [1], [0, 0, 1, 1], [], []>} : vector<8x24xf32>, vector<24x32xf32>, vector<8x32xf32> -> vector<8x32xf32>
      %c1_37 = arith.constant 1 : index
      %c0_38 = arith.constant 0 : index
      %c0_39 = arith.constant 0 : index
      %58 = vector.load %arg9[%c1_37, %c0_38, %c0_39] : memref<2x6x32xf32, #tpu.memory_space<vmem>>, vector<1x6x32xf32>
      %59 = vector.shape_cast %58 : vector<1x6x32xf32> to vector<6x32xf32>
      %cst_40 = arith.constant dense<0.000000e+00> : vector<8x32xf32>
      %60 = tpu.matmul %41, %59, %cst_40 {dimension_numbers = #tpu.dot_dimension_numbers<[1], [0], [0], [1], [0, 0, 1, 1], [], []>} : vector<8x6xf32>, vector<6x32xf32>, vector<8x32xf32> -> vector<8x32xf32>
      %61 = arith.addf %57, %60 : vector<8x32xf32>
      %c1_41 = arith.constant 1 : index
      %c0_42 = arith.constant 0 : index
      %c0_43 = arith.constant 0 : index
      %62 = vector.load %arg10[%c1_41, %c0_42, %c0_43] : memref<2x1x32xf32, #tpu.memory_space<vmem>>, vector<1x1x32xf32>
      %63 = vector.shape_cast %62 : vector<1x1x32xf32> to vector<1x32xf32>
      %64 = vector.broadcast %63 : vector<1x32xf32> to vector<8x32xf32>
      %65 = arith.addf %61, %64 : vector<8x32xf32>
      %cst_44 = arith.constant 0.000000e+00 : f32
      %66 = vector.broadcast %cst_44 : f32 to vector<8x32xf32>
      %67 = arith.maximumf %65, %66 : vector<8x32xf32>
      %c0_45 = arith.constant 0 : index
      %c0_46 = arith.constant 0 : index
      %c0_47 = arith.constant 0 : index
      %68 = vector.load %arg11[%c0_45, %c0_46, %c0_47] : memref<2x32x32xf32, #tpu.memory_space<vmem>>, vector<1x32x32xf32>
      %69 = vector.shape_cast %68 : vector<1x32x32xf32> to vector<32x32xf32>
      %cst_48 = arith.constant dense<0.000000e+00> : vector<8x32xf32>
      %70 = tpu.matmul %54, %69, %cst_48 {dimension_numbers = #tpu.dot_dimension_numbers<[1], [0], [0], [1], [0, 0, 1, 1], [], []>} : vector<8x32xf32>, vector<32x32xf32>, vector<8x32xf32> -> vector<8x32xf32>
      %c0_49 = arith.constant 0 : index
      %c0_50 = arith.constant 0 : index
      %c0_51 = arith.constant 0 : index
      %71 = vector.load %arg12[%c0_49, %c0_50, %c0_51] : memref<2x1x32xf32, #tpu.memory_space<vmem>>, vector<1x1x32xf32>
      %72 = vector.shape_cast %71 : vector<1x1x32xf32> to vector<1x32xf32>
      %73 = vector.broadcast %72 : vector<1x32xf32> to vector<8x32xf32>
      %74 = arith.addf %70, %73 : vector<8x32xf32>
      %cst_52 = arith.constant 0.000000e+00 : f32
      %75 = vector.broadcast %cst_52 : f32 to vector<8x32xf32>
      %76 = arith.maximumf %74, %75 : vector<8x32xf32>
      %c0_53 = arith.constant 0 : index
      %c0_54 = arith.constant 0 : index
      %c0_55 = arith.constant 0 : index
      %77 = vector.load %arg13[%c0_53, %c0_54, %c0_55] : memref<2x1x32xf32, #tpu.memory_space<vmem>>, vector<1x1x32xf32>
      %78 = vector.shape_cast %77 : vector<1x1x32xf32> to vector<1x32xf32>
      %79 = vector.broadcast %78 : vector<1x32xf32> to vector<8x32xf32>
      %80 = arith.mulf %76, %79 : vector<8x32xf32>
      %cst_56 = arith.constant dense<0.000000e+00> : vector<8xf32>
      %81 = vector.multi_reduction <add>, %80, %cst_56 [1] : vector<8x32xf32> to vector<8xf32>
      %82 = vector.shape_cast %81 : vector<8xf32> to vector<8x1xf32>
      %c1_57 = arith.constant 1 : index
      %c0_58 = arith.constant 0 : index
      %c0_59 = arith.constant 0 : index
      %83 = vector.load %arg11[%c1_57, %c0_58, %c0_59] : memref<2x32x32xf32, #tpu.memory_space<vmem>>, vector<1x32x32xf32>
      %84 = vector.shape_cast %83 : vector<1x32x32xf32> to vector<32x32xf32>
      %cst_60 = arith.constant dense<0.000000e+00> : vector<8x32xf32>
      %85 = tpu.matmul %67, %84, %cst_60 {dimension_numbers = #tpu.dot_dimension_numbers<[1], [0], [0], [1], [0, 0, 1, 1], [], []>} : vector<8x32xf32>, vector<32x32xf32>, vector<8x32xf32> -> vector<8x32xf32>
      %c1_61 = arith.constant 1 : index
      %c0_62 = arith.constant 0 : index
      %c0_63 = arith.constant 0 : index
      %86 = vector.load %arg12[%c1_61, %c0_62, %c0_63] : memref<2x1x32xf32, #tpu.memory_space<vmem>>, vector<1x1x32xf32>
      %87 = vector.shape_cast %86 : vector<1x1x32xf32> to vector<1x32xf32>
      %88 = vector.broadcast %87 : vector<1x32xf32> to vector<8x32xf32>
      %89 = arith.addf %85, %88 : vector<8x32xf32>
      %cst_64 = arith.constant 0.000000e+00 : f32
      %90 = vector.broadcast %cst_64 : f32 to vector<8x32xf32>
      %91 = arith.maximumf %89, %90 : vector<8x32xf32>
      %c1_65 = arith.constant 1 : index
      %c0_66 = arith.constant 0 : index
      %c0_67 = arith.constant 0 : index
      %92 = vector.load %arg13[%c1_65, %c0_66, %c0_67] : memref<2x1x32xf32, #tpu.memory_space<vmem>>, vector<1x1x32xf32>
      %93 = vector.shape_cast %92 : vector<1x1x32xf32> to vector<1x32xf32>
      %94 = vector.broadcast %93 : vector<1x32xf32> to vector<8x32xf32>
      %95 = arith.mulf %91, %94 : vector<8x32xf32>
      %cst_68 = arith.constant dense<0.000000e+00> : vector<8xf32>
      %96 = vector.multi_reduction <add>, %95, %cst_68 [1] : vector<8x32xf32> to vector<8xf32>
      %97 = vector.shape_cast %96 : vector<8xf32> to vector<8x1xf32>
      %98 = tpu.concatenate %82, %97 in 1 : vector<8x1xf32>, vector<8x1xf32> -> vector<8x2xf32>
      %c0_69 = arith.constant 0 : index
      %c0_70 = arith.constant 0 : index
      %99 = vector.load %arg14[%c0_69, %c0_70] : memref<1x2xf32, #tpu.memory_space<vmem>>, vector<1x2xf32>
      %100 = vector.broadcast %99 : vector<1x2xf32> to vector<8x2xf32>
      %101 = arith.addf %98, %100 : vector<8x2xf32>
      %c0_71 = arith.constant 0 : index
      %c0_72 = arith.constant 0 : index
      %102 = vector.load %arg15[%c0_71, %c0_72] : memref<8x2xf32, #tpu.memory_space<vmem>>, vector<8x2xf32>
      tpu.vector_store %arg15[%c0_71, %c0_72], %101 {strides = array<i32>} : memref<8x2xf32, #tpu.memory_space<vmem>>, vector<8x2xf32>,
    } else {
    }
    return
  }
  func.func @transform_0(%arg0: i32, %arg1: i32) -> (i32, i32) {
    %c0_i32 = arith.constant 0 : i32
    return %arg0, %arg1 : i32, i32
  }
  func.func @transform_1(%arg0: i32, %arg1: i32) -> (i32, i32) {
    %c0_i32 = arith.constant 0 : i32
    %c0_i32_0 = arith.constant 0 : i32
    return %arg1, %c0_i32 : i32, i32
  }
  func.func @transform_2(%arg0: i32, %arg1: i32) -> (i32, i32) {
    %c0_i32 = arith.constant 0 : i32
    %c0_i32_0 = arith.constant 0 : i32
    %c0_i32_1 = arith.constant 0 : i32
    return %c0_i32, %c0_i32_0 : i32, i32
  }
  func.func @transform_3(%arg0: i32, %arg1: i32) -> (i32, i32) {
    %c0_i32 = arith.constant 0 : i32
    %c0_i32_0 = arith.constant 0 : i32
    %c0_i32_1 = arith.constant 0 : i32
    return %c0_i32, %c0_i32_0 : i32, i32
  }
  func.func @transform_4(%arg0: i32, %arg1: i32) -> (i32, i32) {
    %c0_i32 = arith.constant 0 : i32
    %c0_i32_0 = arith.constant 0 : i32
    %c0_i32_1 = arith.constant 0 : i32
    return %c0_i32, %c0_i32_0 : i32, i32
  }
  func.func @transform_5(%arg0: i32, %arg1: i32) -> (i32, i32) {
    %c0_i32 = arith.constant 0 : i32
    %c0_i32_0 = arith.constant 0 : i32
    return %arg0, %c0_i32 : i32, i32
  }
  func.func @transform_6(%arg0: i32, %arg1: i32) -> (i32, i32, i32) {
    %c0_i32 = arith.constant 0 : i32
    %c0_i32_0 = arith.constant 0 : i32
    %c0_i32_1 = arith.constant 0 : i32
    %c0_i32_2 = arith.constant 0 : i32
    return %c0_i32, %c0_i32_0, %c0_i32_1 : i32, i32, i32
  }
  func.func @transform_7(%arg0: i32, %arg1: i32) -> (i32, i32, i32) {
    %c0_i32 = arith.constant 0 : i32
    %c0_i32_0 = arith.constant 0 : i32
    %c0_i32_1 = arith.constant 0 : i32
    %c0_i32_2 = arith.constant 0 : i32
    return %c0_i32, %c0_i32_0, %c0_i32_1 : i32, i32, i32
  }
  func.func @transform_8(%arg0: i32, %arg1: i32) -> (i32, i32, i32) {
    %c0_i32 = arith.constant 0 : i32
    %c0_i32_0 = arith.constant 0 : i32
    %c0_i32_1 = arith.constant 0 : i32
    %c0_i32_2 = arith.constant 0 : i32
    return %c0_i32, %c0_i32_0, %c0_i32_1 : i32, i32, i32
  }
  func.func @transform_9(%arg0: i32, %arg1: i32) -> (i32, i32, i32) {
    %c0_i32 = arith.constant 0 : i32
    %c0_i32_0 = arith.constant 0 : i32
    %c0_i32_1 = arith.constant 0 : i32
    %c0_i32_2 = arith.constant 0 : i32
    return %c0_i32, %c0_i32_0, %c0_i32_1 : i32, i32, i32
  }
  func.func @transform_10(%arg0: i32, %arg1: i32) -> (i32, i32, i32) {
    %c0_i32 = arith.constant 0 : i32
    %c0_i32_0 = arith.constant 0 : i32
    %c0_i32_1 = arith.constant 0 : i32
    %c0_i32_2 = arith.constant 0 : i32
    return %c0_i32, %c0_i32_0, %c0_i32_1 : i32, i32, i32
  }
  func.func @transform_11(%arg0: i32, %arg1: i32) -> (i32, i32, i32) {
    %c0_i32 = arith.constant 0 : i32
    %c0_i32_0 = arith.constant 0 : i32
    %c0_i32_1 = arith.constant 0 : i32
    %c0_i32_2 = arith.constant 0 : i32
    return %c0_i32, %c0_i32_0, %c0_i32_1 : i32, i32, i32
  }
  func.func @transform_12(%arg0: i32, %arg1: i32) -> (i32, i32) {
    %c0_i32 = arith.constant 0 : i32
    %c0_i32_0 = arith.constant 0 : i32
    %c0_i32_1 = arith.constant 0 : i32
    return %c0_i32, %c0_i32_0 : i32, i32
  }
  func.func @transform_13(%arg0: i32, %arg1: i32) -> (i32, i32) {
    %c0_i32 = arith.constant 0 : i32
    %c0_i32_0 = arith.constant 0 : i32
    return %arg0, %c0_i32 : i32, i32
  }
}

</mosaic_0001>

<llo_original>
// kernel: critic_forward.1
$region0: #{critic_forward.1}
  #allocation0 [shape = 'u32[]', space=smem, size = 0x4, offset = 0x4, fixed_abs, tag = 'smem constant byte address 0x4 - core index']
  #allocation1 [shape = 'u32[72,128]{1,0:T(1,128)}', space=vmem, size = 0x9000, scoped, tag = 'internal scratch']
  #allocation2 [shape = 'f32[8,24]{1,0:T(8,128)}', space=vmem, size = 0x1000, scoped, tag = 'scratch operand']
  %s0 = inlined_call_operand.vmem [shape: f32[16,1024], index: 0, kind: input, shape index: {}]
  %s1 = inlined_call_operand.vmem [shape: f32[1024,24], index: 1, kind: input, shape index: {}]
  %s2 = inlined_call_operand.vmem [shape: f32[1,24], index: 2, kind: input, shape index: {}]
  %s3 = inlined_call_operand.vmem [shape: f32[1,24], index: 3, kind: input, shape index: {}]
  %s4 = inlined_call_operand.vmem [shape: f32[1,24], index: 4, kind: input, shape index: {}]
  %s5 = inlined_call_operand.vmem [shape: f32[16,6], index: 5, kind: input, shape index: {}]
  %s6 = inlined_call_operand.vmem [shape: f32[2,24,32], index: 6, kind: input, shape index: {}]
  %s7 = inlined_call_operand.vmem [shape: f32[2,6,32], index: 7, kind: input, shape index: {}]
  %s8 = inlined_call_operand.vmem [shape: f32[2,1,32], index: 8, kind: input, shape index: {}]
  %s9 = inlined_call_operand.vmem [shape: f32[2,32,32], index: 9, kind: input, shape index: {}]
  %s10 = inlined_call_operand.vmem [shape: f32[2,1,32], index: 10, kind: input, shape index: {}]
  %s11 = inlined_call_operand.vmem [shape: f32[2,1,32], index: 11, kind: input, shape index: {}]
  %s12 = inlined_call_operand.vmem [shape: f32[1,2], index: 12, kind: input, shape index: {}]
  %s13 = inlined_call_operand.vmem [shape: f32[16,2], index: 13, kind: output, shape index: {}]
  %s14 = sld [smem:[#allocation0]]
  $region97: #{critic_forward.1} parent=0
    _
  %s16 = ssub.s32 1, %s14
  %s17 = scalar_select 0, %s16, %s14
  loop: start=0, step=1, limit=10
  $region2: #{critic_forward.1} parent=0 // loop_pre_header
    _
  $region3: #{critic_forward.1} parent=0 // loop_header
    %s19 = sphi 0, %s23
    %p20 = scmp.ge.s32.totalorder %s19, 10
    %s26 = sphi 0, %s38
    %s27 = sphi 0, %s34
    %s28 = sphi 0, %s26
    %s29 = sphi 0, %s27
    %s30 = sphi 0, %s28
    %s31 = sphi 0, %s29
    %s43 = sphi 0, %s45
    %s46 = sphi 0, %s43
    %s47 = sphi 0, %s46
    %s63 = sphi 0, %s47
    %s69 = sphi 0, %s71
    %s72 = sphi 0, %s69
    %s73 = sphi 0, %s72
    %s89 = sphi 0, %s73
    %s93 = sphi 0, %s93
    %s95 = sphi 0, %s93
    %s96 = sphi 0, %s95
    %s110 = sphi 0, %s96
    %s114 = sphi 0, %s114
    %s116 = sphi 0, %s114
    %s117 = sphi 0, %s116
    %s131 = sphi 0, %s117
    %s135 = sphi 0, %s135
    %s137 = sphi 0, %s135
    %s138 = sphi 0, %s137
    %s152 = sphi 0, %s138
    %s158 = sphi 0, %s160
    %s161 = sphi 0, %s158
    %s162 = sphi 0, %s161
    %s178 = sphi 0, %s162
    %s182 = sphi 0, %s182
    %s184 = sphi 0, %s182
    %s185 = sphi 0, %s184
    %s199 = sphi 0, %s185
    %s203 = sphi 0, %s203
    %s205 = sphi 0, %s203
    %s206 = sphi 0, %s205
    %s220 = sphi 0, %s206
    %s224 = sphi 0, %s224
    %s226 = sphi 0, %s224
    %s227 = sphi 0, %s226
    %s241 = sphi 0, %s227
    %s245 = sphi 0, %s245
    %s247 = sphi 0, %s245
    %s248 = sphi 0, %s247
    %s262 = sphi 0, %s248
    %s266 = sphi 0, %s266
    %s268 = sphi 0, %s266
    %s269 = sphi 0, %s268
    %s283 = sphi 0, %s269
    %s287 = sphi 0, %s287
    %s289 = sphi 0, %s287
    %s290 = sphi 0, %s289
    %s304 = sphi 0, %s290
    %s308 = sphi 0, %s308
    %s310 = sphi 0, %s308
    %s311 = sphi 0, %s310
    %s325 = sphi 0, %s311
    %s331 = sphi 0, %s333
    %s334 = sphi 0, %s331
    %s335 = sphi 0, %s334
    %s351 = sphi 0, %s335
  $region4: #{critic_forward.1} parent=0 // loop_header_branch
    %22 = sbr.rel (%p20) target = $region8
  $region5: #{critic_forward.1} parent=0 // loop_body
    %s24 = ssub.s32 %s19, 1
    %s25 = ssub.s32 %s19, 2
    %s32 = sadd.s32 1, %s27
    %p33 = scmp.ge.s32.totalorder %s32, 4
    %s34 = scalar_select %p33, 0, %s32
    %s35 = sadd.s32 1, %s26
    %s36 = scalar_select %p33, %s35, %s26
    %p37 = scmp.ge.s32.totalorder %s36, 2
    %s38 = scalar_select %p37, 0, %s36
    %s39 = ssub.s32 %s26, %s38
    %s40 = ssub.s32 %s27, %s34
    %s41 = sor.u32 %s39, %s40
    %p42 = scmp.eq.s32.totalorder %s41, 0
    %s44 = sadd.s32 %s43, 1
    %s45 = scalar_select %p42, %s43, %s44
    %p48 = pneg %p42
    %p49 = scmp.eq.s32.totalorder %s19, 7
    %p50 = por %p48, %p49
    %p51 = scmp.ne.s32.totalorder %s43, %s46
    %p52 = scmp.eq.s32.totalorder %s19, 0
    %p53 = por %p51, %p52
    %p54 = scmp.ne.s32.totalorder %s43, %s46
    %p55 = scmp.eq.s32.totalorder %s24, 7
    %p56 = por %p54, %p55
    %p57 = scmp.ne.s32.totalorder %s46, %s47
    %p58 = scmp.eq.s32.totalorder %s24, 0
    %p59 = por %p57, %p58
    %p60 = scmp.ne.s32.totalorder %s46, %s47
    %p61 = scmp.eq.s32.totalorder %s25, 7
    %p62 = por %p60, %p61
    %p64 = scmp.ne.s32.totalorder %s47, %s63
    %p65 = scmp.eq.s32.totalorder %s25, 0
    %p66 = por %p64, %p65
    %s67 = ssub.s32 %s27, %s34
    %p68 = scmp.eq.s32.totalorder %s67, 0
    %s70 = sadd.s32 %s69, 1
    %s71 = scalar_select %p68, %s69, %s70
    %p74 = pneg %p68
    %p75 = scmp.eq.s32.totalorder %s19, 7
    %p76 = por %p74, %p75
    %p77 = scmp.ne.s32.totalorder %s69, %s72
    %p78 = scmp.eq.s32.totalorder %s19, 0
    %p79 = por %p77, %p78
    %p80 = scmp.ne.s32.totalorder %s69, %s72
    %p81 = scmp.eq.s32.totalorder %s24, 7
    %p82 = por %p80, %p81
    %p83 = scmp.ne.s32.totalorder %s72, %s73
    %p84 = scmp.eq.s32.totalorder %s24, 0
    %p85 = por %p83, %p84
    %p86 = scmp.ne.s32.totalorder %s72, %s73
    %p87 = scmp.eq.s32.totalorder %s25, 7
    %p88 = por %p86, %p87
    %p90 = scmp.ne.s32.totalorder %s73, %s89
    %p91 = scmp.eq.s32.totalorder %s25, 0
    %p92 = por %p90, %p91
    %s94 = sadd.s32 %s93, 1
    %p97 = scmp.eq.s32.totalorder %s19, 7
    %p98 = scmp.ne.s32.totalorder %s93, %s95
    %p99 = scmp.eq.s32.totalorder %s19, 0
    %p100 = por %p98, %p99
    %p101 = scmp.ne.s32.totalorder %s93, %s95
    %p102 = scmp.eq.s32.totalorder %s24, 7
    %p103 = por %p101, %p102
    %p104 = scmp.ne.s32.totalorder %s95, %s96
    %p105 = scmp.eq.s32.totalorder %s24, 0
    %p106 = por %p104, %p105
    %p107 = scmp.ne.s32.totalorder %s95, %s96
    %p108 = scmp.eq.s32.totalorder %s25, 7
    %p109 = por %p107, %p108
    %p111 = scmp.ne.s32.totalorder %s96, %s110
    %p112 = scmp.eq.s32.totalorder %s25, 0
    %p113 = por %p111, %p112
    %s115 = sadd.s32 %s114, 1
    %p118 = scmp.eq.s32.totalorder %s19, 7
    %p119 = scmp.ne.s32.totalorder %s114, %s116
    %p120 = scmp.eq.s32.totalorder %s19, 0
    %p121 = por %p119, %p120
    %p122 = scmp.ne.s32.totalorder %s114, %s116
    %p123 = scmp.eq.s32.totalorder %s24, 7
    %p124 = por %p122, %p123
    %p125 = scmp.ne.s32.totalorder %s116, %s117
    %p126 = scmp.eq.s32.totalorder %s24, 0
    %p127 = por %p125, %p126
    %p128 = scmp.ne.s32.totalorder %s116, %s117
    %p129 = scmp.eq.s32.totalorder %s25, 7
    %p130 = por %p128, %p129
    %p132 = scmp.ne.s32.totalorder %s117, %s131
    %p133 = scmp.eq.s32.totalorder %s25, 0
    %p134 = por %p132, %p133
    %s136 = sadd.s32 %s135, 1
    %p139 = scmp.eq.s32.totalorder %s19, 7
    %p140 = scmp.ne.s32.totalorder %s135, %s137
    %p141 = scmp.eq.s32.totalorder %s19, 0
    %p142 = por %p140, %p141
    %p143 = scmp.ne.s32.totalorder %s135, %s137
    %p144 = scmp.eq.s32.totalorder %s24, 7
    %p145 = por %p143, %p144
    %p146 = scmp.ne.s32.totalorder %s137, %s138
    %p147 = scmp.eq.s32.totalorder %s24, 0
    %p148 = por %p146, %p147
    %p149 = scmp.ne.s32.totalorder %s137, %s138
    %p150 = scmp.eq.s32.totalorder %s25, 7
    %p151 = por %p149, %p150
    %p153 = scmp.ne.s32.totalorder %s138, %s152
    %p154 = scmp.eq.s32.totalorder %s25, 0
    %p155 = por %p153, %p154
    %s156 = ssub.s32 %s26, %s38
    %p157 = scmp.eq.s32.totalorder %s156, 0
    %s159 = sadd.s32 %s158, 1
    %s160 = scalar_select %p157, %s158, %s159
    %p163 = pneg %p157
    %p164 = scmp.eq.s32.totalorder %s19, 7
    %p165 = por %p163, %p164
    %p166 = scmp.ne.s32.totalorder %s158, %s161
    %p167 = scmp.eq.s32.totalorder %s19, 0
    %p168 = por %p166, %p167
    %p169 = scmp.ne.s32.totalorder %s158, %s161
    %p170 = scmp.eq.s32.totalorder %s24, 7
    %p171 = por %p169, %p170
    %p172 = scmp.ne.s32.totalorder %s161, %s162
    %p173 = scmp.eq.s32.totalorder %s24, 0
    %p174 = por %p172, %p173
    %p175 = scmp.ne.s32.totalorder %s161, %s162
    %p176 = scmp.eq.s32.totalorder %s25, 7
    %p177 = por %p175, %p176
    %p179 = scmp.ne.s32.totalorder %s162, %s178
    %p180 = scmp.eq.s32.totalorder %s25, 0
    %p181 = por %p179, %p180
    %s183 = sadd.s32 %s182, 1
    %p186 = scmp.eq.s32.totalorder %s19, 7
    %p187 = scmp.ne.s32.totalorder %s182, %s184
    %p188 = scmp.eq.s32.totalorder %s19, 0
    %p189 = por %p187, %p188
    %p190 = scmp.ne.s32.totalorder %s182, %s184
    %p191 = scmp.eq.s32.totalorder %s24, 7
    %p192 = por %p190, %p191
    %p193 = scmp.ne.s32.totalorder %s184, %s185
    %p194 = scmp.eq.s32.totalorder %s24, 0
    %p195 = por %p193, %p194
    %p196 = scmp.ne.s32.totalorder %s184, %s185
    %p197 = scmp.eq.s32.totalorder %s25, 7
    %p198 = por %p196, %p197
    %p200 = scmp.ne.s32.totalorder %s185, %s199
    %p201 = scmp.eq.s32.totalorder %s25, 0
    %p202 = por %p200, %p201
    %s204 = sadd.s32 %s203, 1
    %p207 = scmp.eq.s32.totalorder %s19, 7
    %p208 = scmp.ne.s32.totalorder %s203, %s205
    %p209 = scmp.eq.s32.totalorder %s19, 0
    %p210 = por %p208, %p209
    %p211 = scmp.ne.s32.totalorder %s203, %s205
    %p212 = scmp.eq.s32.totalorder %s24, 7
    %p213 = por %p211, %p212
    %p214 = scmp.ne.s32.totalorder %s205, %s206
    %p215 = scmp.eq.s32.totalorder %s24, 0
    %p216 = por %p214, %p215
    %p217 = scmp.ne.s32.totalorder %s205, %s206
    %p218 = scmp.eq.s32.totalorder %s25, 7
    %p219 = por %p217, %p218
    %p221 = scmp.ne.s32.totalorder %s206, %s220
    %p222 = scmp.eq.s32.totalorder %s25, 0
    %p223 = por %p221, %p222
    %s225 = sadd.s32 %s224, 1
    %p228 = scmp.eq.s32.totalorder %s19, 7
    %p229 = scmp.ne.s32.totalorder %s224, %s226
    %p230 = scmp.eq.s32.totalorder %s19, 0
    %p231 = por %p229, %p230
    %p232 = scmp.ne.s32.totalorder %s224, %s226
    %p233 = scmp.eq.s32.totalorder %s24, 7
    %p234 = por %p232, %p233
    %p235 = scmp.ne.s32.totalorder %s226, %s227
    %p236 = scmp.eq.s32.totalorder %s24, 0
    %p237 = por %p235, %p236
    %p238 = scmp.ne.s32.totalorder %s226, %s227
    %p239 = scmp.eq.s32.totalorder %s25, 7
    %p240 = por %p238, %p239
    %p242 = scmp.ne.s32.totalorder %s227, %s241
    %p243 = scmp.eq.s32.totalorder %s25, 0
    %p244 = por %p242, %p243
    %s246 = sadd.s32 %s245, 1
    %p249 = scmp.eq.s32.totalorder %s19, 7
    %p250 = scmp.ne.s32.totalorder %s245, %s247
    %p251 = scmp.eq.s32.totalorder %s19, 0
    %p252 = por %p250, %p251
    %p253 = scmp.ne.s32.totalorder %s245, %s247
    %p254 = scmp.eq.s32.totalorder %s24, 7
    %p255 = por %p253, %p254
    %p256 = scmp.ne.s32.totalorder %s247, %s248
    %p257 = scmp.eq.s32.totalorder %s24, 0
    %p258 = por %p256, %p257
    %p259 = scmp.ne.s32.totalorder %s247, %s248
    %p260 = scmp.eq.s32.totalorder %s25, 7
    %p261 = por %p259, %p260
    %p263 = scmp.ne.s32.totalorder %s248, %s262
    %p264 = scmp.eq.s32.totalorder %s25, 0
    %p265 = por %p263, %p264
    %s267 = sadd.s32 %s266, 1
    %p270 = scmp.eq.s32.totalorder %s19, 7
    %p271 = scmp.ne.s32.totalorder %s266, %s268
    %p272 = scmp.eq.s32.totalorder %s19, 0
    %p273 = por %p271, %p272
    %p274 = scmp.ne.s32.totalorder %s266, %s268
    %p275 = scmp.eq.s32.totalorder %s24, 7
    %p276 = por %p274, %p275
    %p277 = scmp.ne.s32.totalorder %s268, %s269
    %p278 = scmp.eq.s32.totalorder %s24, 0
    %p279 = por %p277, %p278
    %p280 = scmp.ne.s32.totalorder %s268, %s269
    %p281 = scmp.eq.s32.totalorder %s25, 7
    %p282 = por %p280, %p281
    %p284 = scmp.ne.s32.totalorder %s269, %s283
    %p285 = scmp.eq.s32.totalorder %s25, 0
    %p286 = por %p284, %p285
    %s288 = sadd.s32 %s287, 1
    %p291 = scmp.eq.s32.totalorder %s19, 7
    %p292 = scmp.ne.s32.totalorder %s287, %s289
    %p293 = scmp.eq.s32.totalorder %s19, 0
    %p294 = por %p292, %p293
    %p295 = scmp.ne.s32.totalorder %s287, %s289
    %p296 = scmp.eq.s32.totalorder %s24, 7
    %p297 = por %p295, %p296
    %p298 = scmp.ne.s32.totalorder %s289, %s290
    %p299 = scmp.eq.s32.totalorder %s24, 0
    %p300 = por %p298, %p299
    %p301 = scmp.ne.s32.totalorder %s289, %s290
    %p302 = scmp.eq.s32.totalorder %s25, 7
    %p303 = por %p301, %p302
    %p305 = scmp.ne.s32.totalorder %s290, %s304
    %p306 = scmp.eq.s32.totalorder %s25, 0
    %p307 = por %p305, %p306
    %s309 = sadd.s32 %s308, 1
    %p312 = scmp.eq.s32.totalorder %s19, 7
    %p313 = scmp.ne.s32.totalorder %s308, %s310
    %p314 = scmp.eq.s32.totalorder %s19, 0
    %p315 = por %p313, %p314
    %p316 = scmp.ne.s32.totalorder %s308, %s310
    %p317 = scmp.eq.s32.totalorder %s24, 7
    %p318 = por %p316, %p317
    %p319 = scmp.ne.s32.totalorder %s310, %s311
    %p320 = scmp.eq.s32.totalorder %s24, 0
    %p321 = por %p319, %p320
    %p322 = scmp.ne.s32.totalorder %s310, %s311
    %p323 = scmp.eq.s32.totalorder %s25, 7
    %p324 = por %p322, %p323
    %p326 = scmp.ne.s32.totalorder %s311, %s325
    %p327 = scmp.eq.s32.totalorder %s25, 0
    %p328 = por %p326, %p327
    %s329 = ssub.s32 %s26, %s38
    %p330 = scmp.eq.s32.totalorder %s329, 0
    %s332 = sadd.s32 %s331, 1
    %s333 = scalar_select %p330, %s331, %s332
    %p336 = pneg %p330
    %p337 = scmp.eq.s32.totalorder %s19, 7
    %p338 = por %p336, %p337
    %p339 = scmp.ne.s32.totalorder %s331, %s334
    %p340 = scmp.eq.s32.totalorder %s19, 0
    %p341 = por %p339, %p340
    %p342 = scmp.ne.s32.totalorder %s331, %s334
    %p343 = scmp.eq.s32.totalorder %s24, 7
    %p344 = por %p342, %p343
    %p345 = scmp.ne.s32.totalorder %s334, %s335
    %p346 = scmp.eq.s32.totalorder %s24, 0
    %p347 = por %p345, %p346
    %p348 = scmp.ne.s32.totalorder %s334, %s335
    %p349 = scmp.eq.s32.totalorder %s25, 7
    %p350 = por %p348, %p349
    %p352 = scmp.ne.s32.totalorder %s335, %s351
    %p353 = scmp.eq.s32.totalorder %s25, 0
    %p354 = por %p352, %p353
    %p355 = scmp.le.s32.totalorder 1, %s19
    %p356 = scmp.lt.s32.totalorder %s19, 9
    %p357 = pnand %p355, %p356
    %p358 = pneg %p357
    // Predicated region
    $region9: #{critic_forward.1} parent=5 // pred_check
      _
    $region10: #{critic_forward.1} parent=5 // pred_check_branch
      %360 = sbr.rel (%p357) target = $region12
    $region11: #{critic_forward.1} parent=5 // pred_region
      %s361 = ssub.s32 %s19, 1
      // Predicated region
      $region13: #{critic_forward.1} parent=11 // pred_check
        %p362 = pneg %p106
      $region14: #{critic_forward.1} parent=11 // pred_check_branch
        %364 = sbr.rel (%p362) target = $region16
      $region15: #{critic_forward.1} parent=11 // pred_region
        _
      $region16: #{critic_forward.1} parent=11 // pred_fallthru
        _
      // Predicated region
      $region17: #{critic_forward.1} parent=11 // pred_check
        %p365 = pneg %p127
      $region18: #{critic_forward.1} parent=11 // pred_check_branch
        %367 = sbr.rel (%p365) target = $region20
      $region19: #{critic_forward.1} parent=11 // pred_region
        _
      $region20: #{critic_forward.1} parent=11 // pred_fallthru
        _
      // Predicated region
      $region21: #{critic_forward.1} parent=11 // pred_check
        %p368 = pneg %p148
      $region22: #{critic_forward.1} parent=11 // pred_check_branch
        %370 = sbr.rel (%p368) target = $region24
      $region23: #{critic_forward.1} parent=11 // pred_region
        _
      $region24: #{critic_forward.1} parent=11 // pred_fallthru
        _
      // Predicated region
      $region25: #{critic_forward.1} parent=11 // pred_check
        %p371 = pneg %p195
      $region26: #{critic_forward.1} parent=11 // pred_check_branch
        %373 = sbr.rel (%p371) target = $region28
      $region27: #{critic_forward.1} parent=11 // pred_region
        _
      $region28: #{critic_forward.1} parent=11 // pred_fallthru
        _
      // Predicated region
      $region29: #{critic_forward.1} parent=11 // pred_check
        %p374 = pneg %p216
      $region30: #{critic_forward.1} parent=11 // pred_check_branch
        %376 = sbr.rel (%p374) target = $region32
      $region31: #{critic_forward.1} parent=11 // pred_region
        _
      $region32: #{critic_forward.1} parent=11 // pred_fallthru
        _
      // Predicated region
      $region33: #{critic_forward.1} parent=11 // pred_check
        %p377 = pneg %p237
      $region34: #{critic_forward.1} parent=11 // pred_check_branch
        %379 = sbr.rel (%p377) target = $region36
      $region35: #{critic_forward.1} parent=11 // pred_region
        _
      $region36: #{critic_forward.1} parent=11 // pred_fallthru
        _
      // Predicated region
      $region37: #{critic_forward.1} parent=11 // pred_check
        %p380 = pneg %p258
      $region38: #{critic_forward.1} parent=11 // pred_check_branch
        %382 = sbr.rel (%p380) target = $region40
      $region39: #{critic_forward.1} parent=11 // pred_region
        _
      $region40: #{critic_forward.1} parent=11 // pred_fallthru
        _
      // Predicated region
      $region41: #{critic_forward.1} parent=11 // pred_check
        %p383 = pneg %p279
      $region42: #{critic_forward.1} parent=11 // pred_check_branch
        %385 = sbr.rel (%p383) target = $region44
      $region43: #{critic_forward.1} parent=11 // pred_region
        _
      $region44: #{critic_forward.1} parent=11 // pred_fallthru
        _
      // Predicated region
      $region45: #{critic_forward.1} parent=11 // pred_check
        %p386 = pneg %p300
      $region46: #{critic_forward.1} parent=11 // pred_check_branch
        %388 = sbr.rel (%p386) target = $region48
      $region47: #{critic_forward.1} parent=11 // pred_region
        _
      $region48: #{critic_forward.1} parent=11 // pred_fallthru
        _
      // Predicated region
      $region49: #{critic_forward.1} parent=11 // pred_check
        %p389 = pneg %p321
      $region50: #{critic_forward.1} parent=11 // pred_check_branch
        %391 = sbr.rel (%p389) target = $region52
      $region51: #{critic_forward.1} parent=11 // pred_region
        _
      $region52: #{critic_forward.1} parent=11 // pred_fallthru
        _
    $region12: #{critic_forward.1} parent=5 // pred_fallthru
      _
    %p392 = scmp.lt.s32.totalorder %s19, 8
    // Predicated region
    $region53: #{critic_forward.1} parent=5 // pred_check
      %p393 = pneg %p392
    $region54: #{critic_forward.1} parent=5 // pred_check_branch
      %395 = sbr.rel (%p393) target = $region56
    $region55: #{critic_forward.1} parent=5 // pred_region
      // Predicated region
      $region57: #{critic_forward.1} parent=55 // pred_check
        %p396 = pneg %p53
      $region58: #{critic_forward.1} parent=55 // pred_check_branch
        %398 = sbr.rel (%p396) target = $region60
      $region59: #{critic_forward.1} parent=55 // pred_region
        %s399 = smul.u32 2, %s27
        %p400 = scmp.lt.s32.totalorder %s26, 1
        %s401 = scalar_select %p400, %s26, 1
        %p402 = scmp.lt.s32.totalorder %s399, 7
        %s403 = scalar_select %p402, %s399, 7
        %s404 = smul.addr %s401, 8
        %s405 = sadd.s32 %s403, %s404
        %s406 = smul.addr %s405, 8
        %s407 = scalar_lea.vmem %s0, %s406
        %s408 = smul.u32 2, %s27
      $region60: #{critic_forward.1} parent=55 // pred_fallthru
        _
      // Predicated region
      $region61: #{critic_forward.1} parent=55 // pred_check
        %p409 = pneg %p79
      $region62: #{critic_forward.1} parent=55 // pred_check_branch
        %411 = sbr.rel (%p409) target = $region64
      $region63: #{critic_forward.1} parent=55 // pred_region
        %s412 = smul.u32 32, %s27
        %p413 = scmp.lt.s32.totalorder %s412, 127
        %s414 = scalar_select %p413, %s412, 127
        %s415 = smul.addr %s414, 8
        %s416 = scalar_lea.vmem %s1, %s415
        %s417 = smul.u32 32, %s27
      $region64: #{critic_forward.1} parent=55 // pred_fallthru
        _
      // Predicated region
      $region65: #{critic_forward.1} parent=55 // pred_check
        %p418 = pneg %p168
      $region66: #{critic_forward.1} parent=55 // pred_check_branch
        %420 = sbr.rel (%p418) target = $region68
      $region67: #{critic_forward.1} parent=55 // pred_region
        %p421 = scmp.lt.s32.totalorder %s26, 1
        %s422 = scalar_select %p421, %s26, 1
        %s423 = smul.addr %s422, 8
        %s424 = scalar_lea.vmem %s5, %s423
      $region68: #{critic_forward.1} parent=55 // pred_fallthru
        _
    $region56: #{critic_forward.1} parent=5 // pred_fallthru
      _
    %p425 = scmp.le.s32.totalorder 1, %s19
    %p426 = scmp.lt.s32.totalorder %s19, 9
    %p427 = pnand %p425, %p426
    %p428 = pneg %p427
    // Predicated region
    $region69: #{critic_forward.1} parent=5 // pred_check
      _
    $region70: #{critic_forward.1} parent=5 // pred_check_branch
      %430 = sbr.rel (%p427) target = $region72
    $region71: #{critic_forward.1} parent=5 // pred_region
      %s431 = ssub.s32 %s19, 1
      %s432 = smul.u32 2, %s29
      %p433 = scmp.lt.s32.totalorder %s28, 1
      %s434 = scalar_select %p433, %s28, 1
      %p435 = scmp.lt.s32.totalorder %s432, 7
      %s436 = scalar_select %p435, %s432, 7
      %s437 = smul.addr %s434, 8
      %s438 = sadd.s32 %s436, %s437
      %s439 = smul.addr %s438, 8
      %s440 = scalar_lea.vmem %s0, %s439
      %p441 = pneg %p59
      %p442 = pneg %p56
      %s443 = smul.u32 32, %s29
      %p444 = scmp.lt.s32.totalorder %s443, 127
      %s445 = scalar_select %p444, %s443, 127
      %s446 = smul.addr %s445, 8
      %s447 = scalar_lea.vmem %s1, %s446
      %p448 = pneg %p85
      %p449 = pneg %p82
      %p450 = pneg %p106
      %p451 = pneg %p103
      %p452 = pneg %p127
      %p453 = pneg %p124
      %p454 = pneg %p148
      %p455 = pneg %p145
      %p456 = scmp.lt.s32.totalorder %s28, 1
      %s457 = scalar_select %p456, %s28, 1
      %s458 = smul.addr %s457, 8
      %s459 = scalar_lea.vmem %s5, %s458
      %p460 = pneg %p174
      %p461 = pneg %p171
      %p462 = pneg %p195
      %p463 = pneg %p192
      %p464 = pneg %p216
      %p465 = pneg %p213
      %p466 = pneg %p237
      %p467 = pneg %p234
      %p468 = pneg %p258
      %p469 = pneg %p255
      %p470 = pneg %p279
      %p471 = pneg %p276
      %p472 = pneg %p300
      %p473 = pneg %p297
      %p474 = pneg %p321
      %p475 = pneg %p318
      %p476 = pneg %p347
      %p477 = pneg %p344
      %p478 = scmp.lt.s32.totalorder %s28, 1
      %s479 = scalar_select %p478, %s28, 1
      %s480 = smul.addr %s479, 8
      %s481 = scalar_lea.vmem %s13, %s480
      %s482 = smul.u32 2, %s29
      %p483 = scmp.lt.s32.totalorder %s28, 1
      %s484 = scalar_select %p483, %s28, 1
      %p485 = scmp.lt.s32.totalorder %s482, 7
      %s486 = scalar_select %p485, %s482, 7
      %s487 = smul.addr %s484, 8
      %s488 = sadd.s32 %s486, %s487
      %s489 = smul.addr %s488, 8
      %s490 = scalar_lea.vmem %s0, %s489
      %s491 = smul.u32 2, %s29
      %s492 = smul.u32 32, %s29
      %p493 = scmp.lt.s32.totalorder %s492, 127
      %s494 = scalar_select %p493, %s492, 127
      %s495 = smul.addr %s494, 8
      %s496 = scalar_lea.vmem %s1, %s495
      %s497 = smul.u32 32, %s29
      %p498 = scmp.lt.s32.totalorder %s28, 1
      %s499 = scalar_select %p498, %s28, 1
      %s500 = smul.addr %s499, 8
      %s501 = scalar_lea.vmem %s5, %s500
      %p502 = scmp.lt.s32.totalorder %s28, 1
      %s503 = scalar_select %p502, %s28, 1
      %s504 = smul.addr %s503, 8
      %s505 = scalar_lea.vmem %s13, %s504
      %v506 = vld [vmem:[%s490] sm:$0xff]
      %v507 = vld [vmem:[%s490 + $0x8] sm:$0xff]
      %v508 = vld [vmem:[%s496] sm:$0xff]
      %v509 = vld [vmem:[%s496 + $0x8] sm:$0xff]
      %v510 = vld [vmem:[%s496 + $0x10] sm:$0xff]
      %v511 = vld [vmem:[%s496 + $0x18] sm:$0xff]
      %v512 = vld [vmem:[%s496 + $0x20] sm:$0xff]
      %v513 = vld [vmem:[%s496 + $0x28] sm:$0xff]
      %v514 = vld [vmem:[%s496 + $0x30] sm:$0xff]
      %v515 = vld [vmem:[%s496 + $0x38] sm:$0xff]
      %v516 = vld [vmem:[%s496 + $0x40] sm:$0xff]
      %v517 = vld [vmem:[%s496 + $0x48] sm:$0xff]
      %v518 = vld [vmem:[%s496 + $0x50] sm:$0xff]
      %v519 = vld [vmem:[%s496 + $0x58] sm:$0xff]
      %v520 = vld [vmem:[%s496 + $0x60] sm:$0xff]
      %v521 = vld [vmem:[%s496 + $0x68] sm:$0xff]
      %v522 = vld [vmem:[%s496 + $0x70] sm:$0xff]
      %v523 = vld [vmem:[%s496 + $0x78] sm:$0xff]
      %v524 = vld [vmem:[%s496 + $0x80] sm:$0xff]
      %v525 = vld [vmem:[%s496 + $0x88] sm:$0xff]
      %v526 = vld [vmem:[%s496 + $0x90] sm:$0xff]
      %v527 = vld [vmem:[%s496 + $0x98] sm:$0xff]
      %v528 = vld [vmem:[%s496 + $0xa0] sm:$0xff]
      %v529 = vld [vmem:[%s496 + $0xa8] sm:$0xff]
      %v530 = vld [vmem:[%s496 + $0xb0] sm:$0xff]
      %v531 = vld [vmem:[%s496 + $0xb8] sm:$0xff]
      %v532 = vld [vmem:[%s496 + $0xc0] sm:$0xff]
      %v533 = vld [vmem:[%s496 + $0xc8] sm:$0xff]
      %v534 = vld [vmem:[%s496 + $0xd0] sm:$0xff]
      %v535 = vld [vmem:[%s496 + $0xd8] sm:$0xff]
      %v536 = vld [vmem:[%s496 + $0xe0] sm:$0xff]
      %v537 = vld [vmem:[%s496 + $0xe8] sm:$0xff]
      %v538 = vld [vmem:[%s496 + $0xf0] sm:$0xff]
      %v539 = vld [vmem:[%s496 + $0xf8] sm:$0xff]
      %540 = vmatpush.msra.mxu0 %v523
      %541 = vmatpush.msra.mxu0 %v522
      %542 = vmatpush.msra.mxu0 %v521
      %543 = vmatpush.msra.mxu0 %v520
      %544 = vmatpush.msra.mxu0 %v519
      %545 = vmatpush.msra.mxu0 %v518
      %546 = vmatpush.msra.mxu0 %v517
      %547 = vmatpush.msra.mxu0 %v516
      %548 = vmatpush.msra.mxu0 %v515
      %549 = vmatpush.msra.mxu0 %v514
      %550 = vmatpush.msra.mxu0 %v513
      %551 = vmatpush.msra.mxu0 %v512
      %552 = vmatpush.msra.mxu0 %v511
      %553 = vmatpush.msra.mxu0 %v510
      %554 = vmatpush.msra.mxu0 %v509
      %555 = vmatpush.msra.mxu0 %v508
      %556 = vmatmul.f32.gmra.mxu0 %v506
      %v557 = vpop.f32.mrf.mxu0
      %v558 = vadd.f32 0.0, %v557
      %559 = vdwg.mxu0
      %560 = vmatpush.msra.mxu0 %v539
      %561 = vmatpush.msra.mxu0 %v538
      %562 = vmatpush.msra.mxu0 %v537
      %563 = vmatpush.msra.mxu0 %v536
      %564 = vmatpush.msra.mxu0 %v535
      %565 = vmatpush.msra.mxu0 %v534
      %566 = vmatpush.msra.mxu0 %v533
      %567 = vmatpush.msra.mxu0 %v532
      %568 = vmatpush.msra.mxu0 %v531
      %569 = vmatpush.msra.mxu0 %v530
      %570 = vmatpush.msra.mxu0 %v529
      %571 = vmatpush.msra.mxu0 %v528
      %572 = vmatpush.msra.mxu0 %v527
      %573 = vmatpush.msra.mxu0 %v526
      %574 = vmatpush.msra.mxu0 %v525
      %575 = vmatpush.msra.mxu0 %v524
      %576 = vmatmul.f32.gmra.mxu0 %v507
      %v577 = vpop.f32.mrf.mxu0
      %v578 = vadd.f32 %v558, %v577
      %579 = vdwg.mxu0
      %p580 = scmp.eq.s32.totalorder %s29, 0
      // Predicated region
      $region73: #{critic_forward.1} parent=71 // pred_check
        %p581 = pneg %p580
      $region74: #{critic_forward.1} parent=71 // pred_check_branch
        %583 = sbr.rel (%p581) target = $region76
      $region75: #{critic_forward.1} parent=71 // pred_region
        %vm584 = vcmask 195584
        %585 = vst.msk [vmem:[#allocation2] sm:$0xff] %vm584, %v578
      $region76: #{critic_forward.1} parent=71 // pred_fallthru
        _
      %p586 = scmp.gt.s32.totalorder %s29, 0
      // Predicated region
      $region77: #{critic_forward.1} parent=71 // pred_check
        %p587 = pneg %p586
      $region78: #{critic_forward.1} parent=71 // pred_check_branch
        %589 = sbr.rel (%p587) target = $region80
      $region79: #{critic_forward.1} parent=71 // pred_region
        %v590 = vld [vmem:[#allocation2] sm:$0xff]
        %v591 = vadd.f32 %v590, %v578
        %vm592 = vcmask 195584
        %593 = vst.msk [vmem:[#allocation2] sm:$0xff] %vm592, %v591
      $region80: #{critic_forward.1} parent=71 // pred_fallthru
        _
      %p594 = scmp.eq.s32.totalorder %s29, 3
      // Predicated region
      $region81: #{critic_forward.1} parent=71 // pred_check
        %p595 = pneg %p594
      $region82: #{critic_forward.1} parent=71 // pred_check_branch
        %597 = sbr.rel (%p595) target = $region84
      $region83: #{critic_forward.1} parent=71 // pred_region
        %v598 = vld [vmem:[#allocation2] sm:$0xff]
        %v599 = vld [vmem:[%s2] sm:$0x1]
        %v601 = vperm.slane %v599, 0
        %v603 = vadd.f32 %v598, %v601
        %vm604 = vcmask 195584
        %v605 = vsel %vm604, %v603, 0.0
        %606 = vadd.xlane.f32.xlu0 %v605
        %v607 = vpop.xlane.xlu0 %606
        %v608 = vrcp.pop 24.0
        %v609 = vmul.f32 24.0, %v608
        %v610 = vsub.f32 1.0, %v609
        %v611 = vmul.f32 %v608, %v610
        %v612 = vadd.f32 %v608, %v611
        %vm613 = vweird.f32 %v608
        %v614 = vsel %vm613, %v608, %v612
        %v615 = vmul.f32 %v607, %v614
        %v616 = vsub.f32 %v603, %v615
        %v617 = vmul.f32 %v616, %v616
        %v618 = vsel %vm604, %v617, 0.0
        %619 = vadd.xlane.f32.xlu0 %v618
        %v620 = vpop.xlane.xlu0 %619
        %v621 = vmul.f32 %v620, %v614
        %v622 = vadd.f32 %v621, 1e-05
        %v623 = vrsqrt.pop %v622
        %v624 = vmul.f32 %v623, %v622
        %v625 = vmul.f32 %v624, %v623
        %v626 = vmul.f32 0.5, %v625
        %v627 = vsub.f32 1.5, %v626
        %v628 = vmul.f32 %v623, %v627
        %vm629 = vweird.f32 %v622
        %vm630 = vweird.f32 %v623
        %vm631 = vmor %vm629, %vm630
        %v632 = vsel %vm631, %v623, %v628
        %v633 = vmul.f32 %v616, %v632
        %v634 = vld [vmem:[%s3] sm:$0x1]
        %v636 = vperm.slane %v634, 0
        %v638 = vmul.f32 %v633, %v636
        %v639 = vld [vmem:[%s4] sm:$0x1]
        %v641 = vperm.slane %v639, 0
        %v643 = vadd.f32 %v638, %v641
        %v644 = vtanh.pop %v643
        %v645 = vld [vmem:[%s501] sm:$0xff]
        %v646 = vld [vmem:[%s6] sm:$0xff]
        %v647 = vld [vmem:[%s6 + $0x8] sm:$0xff]
        %v648 = vld [vmem:[%s6 + $0x10] sm:$0xff]
        %v649 = vld [vmem:[%s7] sm:$0x3f]
        %vm650 = vcmask 48128
        %v652 = vsel %vm650, %v645, 0
        %vm654 = vcmask 1045504
        %v656 = vsel %vm654, %v649, 0
        %658 = vmatpush.msra.mxu0 0.0
        %659 = vmatpush.msra.mxu0 0.0
        %660 = vmatpush.msra.mxu0 0.0
        %661 = vmatpush.msra.mxu0 0.0
        %662 = vmatpush.msra.mxu0 0.0
        %663 = vmatpush.msra.mxu0 0.0
        %664 = vmatpush.msra.mxu0 0.0
        %665 = vmatpush.msra.mxu0 0.0
        %666 = vmatpush.msra.mxu0 0.0
        %667 = vmatpush.msra.mxu0 0.0
        %668 = vmatpush.msra.mxu0 0.0
        %669 = vmatpush.msra.mxu0 0.0
        %670 = vmatpush.msra.mxu0 0.0
        %671 = vmatpush.msra.mxu0 0.0
        %672 = vmatpush.msra.mxu0 0.0
        %673 = vmatpush.msra.mxu0 %v656
        %674 = vmatmul.f32.gmra.mxu0 %v652
        %v675 = vpop.f32.mrf.mxu0
        %v676 = vadd.f32 0.0, %v675
        %677 = vdwg.mxu0
        %v679 = vsel %vm604, %v644, 0
        %681 = vmatpush.msra.mxu0 0.0
        %682 = vmatpush.msra.mxu0 0.0
        %683 = vmatpush.msra.mxu0 0.0
        %684 = vmatpush.msra.mxu0 0.0
        %685 = vmatpush.msra.mxu0 0.0
        %686 = vmatpush.msra.mxu0 0.0
        %687 = vmatpush.msra.mxu0 0.0
        %688 = vmatpush.msra.mxu0 0.0
        %689 = vmatpush.msra.mxu0 0.0
        %690 = vmatpush.msra.mxu0 0.0
        %691 = vmatpush.msra.mxu0 0.0
        %692 = vmatpush.msra.mxu0 0.0
        %693 = vmatpush.msra.mxu0 0.0
        %694 = vmatpush.msra.mxu0 %v648
        %695 = vmatpush.msra.mxu0 %v647
        %696 = vmatpush.msra.mxu0 %v646
        %697 = vmatmul.f32.gmra.mxu0 %v679
        %v698 = vpop.f32.mrf.mxu0
        %v699 = vadd.f32 %v676, %v698
        %700 = vdwg.mxu0
        %v701 = vld [vmem:[%s8] sm:$0x1]
        %v703 = vperm.slane %v701, 0
        %v705 = vadd.f32 %v699, %v703
        %v706 = vmax.f32 %v705, 0.0
        %s707 = scalar_lea.vmem %s6, 24
        %v708 = vld [vmem:[%s707] sm:$0xff]
        %v709 = vld [vmem:[%s707 + $0x8] sm:$0xff]
        %v710 = vld [vmem:[%s707 + $0x10] sm:$0xff]
        %s711 = scalar_lea.vmem %s7, 8
        %v712 = vld [vmem:[%s711] sm:$0x3f]
        %v714 = vsel %vm654, %v712, 0
        %716 = vmatpush.msra.mxu0 0.0
        %717 = vmatpush.msra.mxu0 0.0
        %718 = vmatpush.msra.mxu0 0.0
        %719 = vmatpush.msra.mxu0 0.0
        %720 = vmatpush.msra.mxu0 0.0
        %721 = vmatpush.msra.mxu0 0.0
        %722 = vmatpush.msra.mxu0 0.0
        %723 = vmatpush.msra.mxu0 0.0
        %724 = vmatpush.msra.mxu0 0.0
        %725 = vmatpush.msra.mxu0 0.0
        %726 = vmatpush.msra.mxu0 0.0
        %727 = vmatpush.msra.mxu0 0.0
        %728 = vmatpush.msra.mxu0 0.0
        %729 = vmatpush.msra.mxu0 0.0
        %730 = vmatpush.msra.mxu0 0.0
        %731 = vmatpush.msra.mxu0 %v714
        %732 = vmatmul.f32.gmra.mxu0 %v652
        %v733 = vpop.f32.mrf.mxu0
        %v734 = vadd.f32 0.0, %v733
        %735 = vdwg.mxu0
        %736 = vmatpush.msra.mxu0 0.0
        %737 = vmatpush.msra.mxu0 0.0
        %738 = vmatpush.msra.mxu0 0.0
        %739 = vmatpush.msra.mxu0 0.0
        %740 = vmatpush.msra.mxu0 0.0
        %741 = vmatpush.msra.mxu0 0.0
        %742 = vmatpush.msra.mxu0 0.0
        %743 = vmatpush.msra.mxu0 0.0
        %744 = vmatpush.msra.mxu0 0.0
        %745 = vmatpush.msra.mxu0 0.0
        %746 = vmatpush.msra.mxu0 0.0
        %747 = vmatpush.msra.mxu0 0.0
        %748 = vmatpush.msra.mxu0 0.0
        %749 = vmatpush.msra.mxu0 %v710
        %750 = vmatpush.msra.mxu0 %v709
        %751 = vmatpush.msra.mxu0 %v708
        %752 = vmatmul.f32.gmra.mxu0 %v679
        %v753 = vpop.f32.mrf.mxu0
        %v754 = vadd.f32 %v734, %v753
        %755 = vdwg.mxu0
        %s756 = scalar_lea.vmem %s8, 1
        %v757 = vld [vmem:[%s756] sm:$0x1]
        %v759 = vperm.slane %v757, 0
        %v761 = vadd.f32 %v754, %v759
        %v762 = vmax.f32 %v761, 0.0
        %v763 = vld [vmem:[%s9] sm:$0xff]
        %v764 = vld [vmem:[%s9 + $0x8] sm:$0xff]
        %v765 = vld [vmem:[%s9 + $0x10] sm:$0xff]
        %v766 = vld [vmem:[%s9 + $0x18] sm:$0xff]
        %v767 = vld [vmem:[%s10] sm:$0x1]
        %v769 = vperm.slane %v767, 0
        %vm771 = vcmask 261120
        %v773 = vsel %vm771, %v706, 0
        %775 = vmatpush.msra.mxu0 0.0
        %776 = vmatpush.msra.mxu0 0.0
        %777 = vmatpush.msra.mxu0 0.0
        %778 = vmatpush.msra.mxu0 0.0
        %779 = vmatpush.msra.mxu0 0.0
        %780 = vmatpush.msra.mxu0 0.0
        %781 = vmatpush.msra.mxu0 0.0
        %782 = vmatpush.msra.mxu0 0.0
        %783 = vmatpush.msra.mxu0 0.0
        %784 = vmatpush.msra.mxu0 0.0
        %785 = vmatpush.msra.mxu0 0.0
        %786 = vmatpush.msra.mxu0 0.0
        %787 = vmatpush.msra.mxu0 %v766
        %788 = vmatpush.msra.mxu0 %v765
        %789 = vmatpush.msra.mxu0 %v764
        %790 = vmatpush.msra.mxu0 %v763
        %791 = vmatmul.f32.gmra.mxu0 %v773
        %v792 = vpop.f32.mrf.mxu0
        %v793 = vadd.f32 %v769, %v792
        %794 = vdwg.mxu0
        %v795 = vmax.f32 %v793, 0.0
        %v796 = vld [vmem:[%s11] sm:$0x1]
        %v798 = vperm.slane %v796, 0
        %v800 = vmul.f32 %v795, %v798
        %v801 = vsel %vm771, %v800, 0.0
        %802 = vadd.xlane.f32.xlu0 %v801
        %v803 = vpop.xlane.xlu0 %802
        %s804 = scalar_lea.vmem %s9, 32
        %v805 = vld [vmem:[%s804] sm:$0xff]
        %v806 = vld [vmem:[%s804 + $0x8] sm:$0xff]
        %v807 = vld [vmem:[%s804 + $0x10] sm:$0xff]
        %v808 = vld [vmem:[%s804 + $0x18] sm:$0xff]
        %s809 = scalar_lea.vmem %s10, 1
        %v810 = vld [vmem:[%s809] sm:$0x1]
        %v812 = vperm.slane %v810, 0
        %v815 = vsel %vm771, %v762, 0
        %817 = vmatpush.msra.mxu0 0.0
        %818 = vmatpush.msra.mxu0 0.0
        %819 = vmatpush.msra.mxu0 0.0
        %820 = vmatpush.msra.mxu0 0.0
        %821 = vmatpush.msra.mxu0 0.0
        %822 = vmatpush.msra.mxu0 0.0
        %823 = vmatpush.msra.mxu0 0.0
        %824 = vmatpush.msra.mxu0 0.0
        %825 = vmatpush.msra.mxu0 0.0
        %826 = vmatpush.msra.mxu0 0.0
        %827 = vmatpush.msra.mxu0 0.0
        %828 = vmatpush.msra.mxu0 0.0
        %829 = vmatpush.msra.mxu0 %v808
        %830 = vmatpush.msra.mxu0 %v807
        %831 = vmatpush.msra.mxu0 %v806
        %832 = vmatpush.msra.mxu0 %v805
        %833 = vmatmul.f32.gmra.mxu0 %v815
        %v834 = vpop.f32.mrf.mxu0
        %v835 = vadd.f32 %v812, %v834
        %836 = vdwg.mxu0
        %v837 = vmax.f32 %v835, 0.0
        %s838 = scalar_lea.vmem %s11, 1
        %v839 = vld [vmem:[%s838] sm:$0x1]
        %v841 = vperm.slane %v839, 0
        %v843 = vmul.f32 %v837, %v841
        %v844 = vsel %vm771, %v843, 0.0
        %845 = vadd.xlane.f32.xlu0 %v844
        %v846 = vpop.xlane.xlu0 %845
        %vm847 = vcmask 7168
        %v848 = vsel %vm847, %v803, %v846
        %v849 = vld [vmem:[%s12] sm:$0x1]
        %v851 = vperm.slane %v849, 0
        %v853 = vadd.f32 %v848, %v851
        %vm854 = vcmask 15360
        %855 = vst.msk [vmem:[%s505] sm:$0xff] %vm854, %v853
      $region84: #{critic_forward.1} parent=71 // pred_fallthru
        _
      %p856 = scmp.lt.s32.totalorder %s28, 1
      %s857 = scalar_select %p856, %s28, 1
      %s858 = smul.addr %s857, 8
      %s859 = scalar_lea.vmem %s13, %s858
      // Predicated region
      $region85: #{critic_forward.1} parent=71 // pred_check
        %p860 = pneg %p344
      $region86: #{critic_forward.1} parent=71 // pred_check_branch
        %862 = sbr.rel (%p860) target = $region88
      $region87: #{critic_forward.1} parent=71 // pred_region
        _
      $region88: #{critic_forward.1} parent=71 // pred_fallthru
        _
    $region72: #{critic_forward.1} parent=5 // pred_fallthru
      _
    %p863 = scmp.le.s32.totalorder 2, %s19
    // Predicated region
    $region89: #{critic_forward.1} parent=5 // pred_check
      %p864 = pneg %p863
    $region90: #{critic_forward.1} parent=5 // pred_check_branch
      %866 = sbr.rel (%p864) target = $region92
    $region91: #{critic_forward.1} parent=5 // pred_region
      %s867 = ssub.s32 %s19, 2
      // Predicated region
      $region93: #{critic_forward.1} parent=91 // pred_check
        %p868 = pneg %p350
      $region94: #{critic_forward.1} parent=91 // pred_check_branch
        %870 = sbr.rel (%p868) target = $region96
      $region95: #{critic_forward.1} parent=91 // pred_region
        %p871 = scmp.lt.s32.totalorder %s30, 1
        %s872 = scalar_select %p871, %s30, 1
        %s873 = smul.addr %s872, 8
        %s874 = scalar_lea.vmem %s13, %s873
      $region96: #{critic_forward.1} parent=91 // pred_fallthru
        _
    $region92: #{critic_forward.1} parent=5 // pred_fallthru
      _
  $region6: #{critic_forward.1} parent=0 // loop_footer
    %s23 = sadd.s32 1, %s19
  $region7: #{critic_forward.1} parent=0 // loop_footer_branch
    %18 = sbr.rel target = $region3
  $region8: #{critic_forward.1} parent=0 // loop_exit
    _

</llo_original>
